<compile_context>
chip_gen: v7x
topology: tpu7x:2x2x1
jax: 0.10.0
libtpu: 0.0.40
codegen_flags: <defaults>
</compile_context>

<pallas_src>
import functools

import jax
import jax.numpy as jnp
from jax.experimental import pallas as pl
from jax.experimental.pallas import tpu as pltpu


def make_divisible(v, divisor=8, min_value=None):
    if min_value is None:
        min_value = divisor
    new_v = max(min_value, int(v + divisor / 2) // divisor * divisor)
    if new_v < 0.9 * v:
        new_v += divisor
    return new_v


# ---------------------------------------------------------------------------
# Kernels
# ---------------------------------------------------------------------------

def se_fused_kernel(x_ref, w1t_ref, b1_ref, w2t_ref, b2_ref, o_ref):
    """Single-pass SE: pool -> fc1/relu -> fc2/sigmoid -> scale.

    x_ref block: (Nb, C, HW) with HW on lanes (lane-dense loads/stores).
    """
    # Global average pool over spatial lanes with f32 accumulation: (Nb, C).
    pooled = jnp.mean(x_ref[...], axis=-1, dtype=jnp.float32)

    # fc1 (1x1 conv): (Nb, C) @ (C, S) + (1, S), ReLU.
    s = jnp.dot(pooled, w1t_ref[...], preferred_element_type=jnp.float32)
    s = jnp.maximum(s + b1_ref[...], 0.0)

    # fc2 (1x1 conv): (Nb, S) @ (S, C) + (1, C), sigmoid gate.
    g = jnp.dot(s, w2t_ref[...], preferred_element_type=jnp.float32)
    gate = jax.nn.sigmoid(g + b2_ref[...])                       # (Nb, C)

    # Re-read x from VMEM for the scale (vld is cheap; kernel is DMA-bound):
    # avoids holding the whole block live across the FC/sigmoid section.
    xr = x_ref[...]
    o_ref[...] = xr * gate[:, :, None].astype(xr.dtype)


def se_gate_kernel(x_ref, w1t_ref, b1_ref, w2t_ref, b2_ref, gate_ref, acc_ref,
                   *, inv_hw):
    """Fallback path: HW-tiled pool + FC gate.  Grid = (N, HW_tiles)."""
    h = pl.program_id(1)

    @pl.when(h == 0)
    def _():
        acc_ref[...] = jnp.zeros_like(acc_ref)

    # Partial spatial sum for this HW tile, f32 accumulation: (1, C).
    acc_ref[...] += jnp.sum(x_ref[...], axis=-1, dtype=jnp.float32)

    @pl.when(h == pl.num_programs(1) - 1)
    def _():
        pooled = acc_ref[...] * inv_hw                            # (1, C)
        s = jnp.dot(pooled, w1t_ref[...], preferred_element_type=jnp.float32)
        s = jnp.maximum(s + b1_ref[...], 0.0)
        g = jnp.dot(s, w2t_ref[...], preferred_element_type=jnp.float32)
        gate_ref[...] = jax.nn.sigmoid(g + b2_ref[...])[:, :, None]  # (1,C,1)


def se_scale_kernel(x_ref, gate_ref, o_ref):
    """Fallback path: HW-tiled scale, out = x * gate (gate broadcast on HW)."""
    xr = x_ref[...]
    o_ref[...] = xr * gate_ref[...].astype(xr.dtype)


# ---------------------------------------------------------------------------
# Sizing helpers
# ---------------------------------------------------------------------------

def _tpu_vmem_capacity_bytes():
    """Physical VMEM per core; conservative 64 MiB if the query fails."""
    try:
        info = pltpu.get_tpu_info()
        cap = int(getattr(info, "vmem_capacity_bytes", 0))
        if cap > 0:
            return cap
    except Exception:
        pass
    return 64 << 20


def _weight_spec(shape, index_map):
    """BlockSpec for a constant-index (resident) operand, single-buffered."""
    try:
        return pl.BlockSpec(shape, index_map, pipeline_mode=pl.Buffered(1))
    except TypeError:            # jax build without BlockSpec.pipeline_mode
        return pl.BlockSpec(shape, index_map)


def _default_spec(shape, index_map):
    return pl.BlockSpec(shape, index_map)


def _try_single_buffered(build):
    """Prefer single-buffered resident weights; retry with default buffering
    if this jax/Mosaic build rejects pipeline_mode=Buffered(1)."""
    try:
        return build(True)
    except Exception:
        return build(False)


def _pick_batch_block(n, per_batch_bytes, target_bytes, min_steps=4):
    """Largest divisor nb of n with nb*per_batch_bytes <= target_bytes while
    keeping >= min_steps grid steps (>= 2 per TensorCore on v7x) when the
    batch size allows it."""
    min_steps = min(min_steps, n)
    best = 1
    for nb in range(1, n + 1):
        if n % nb:
            continue
        if nb * per_batch_bytes > target_bytes:
            continue
        if n // nb >= min_steps:
            best = nb
    return best


def _pick_hw_tile(hw, per_col_bytes, target_bytes):
    """Lane-aligned (multiple-of-128) divisor of hw whose (C, tile) block fits
    target_bytes; falls back to the smallest aligned divisor, else full hw."""
    cands = [t for t in range(128, hw, 128) if hw % t == 0]
    fitting = [t for t in cands if t * per_col_bytes <= target_bytes]
    if fitting:
        return max(fitting)
    if cands:
        return min(cands)
    # TODO(synk): HW has no 128-aligned divisor; consider padding HW (masked
    # tail tile) or tiling the channel axis instead of the full spatial extent.
    return hw


# ---------------------------------------------------------------------------
# Wrapper
# ---------------------------------------------------------------------------

def squeeze_excitation(x, w1, b1, w2, b2, *, donate_x=False, force_split=False):
    """SqueezeExcitation forward.

    x: (N, C, H, W).  Weights in the PyTorch squeezed 1x1-conv layout:
    w1: (S, C), b1: (S, 1), w2: (C, S), b2: (C, 1).
    """
    N, C, H, W = x.shape
    S = w1.shape[0]
    assert w1.shape == (S, C) and w2.shape == (C, S)
    assert b1.shape == (S, 1) and b2.shape == (C, 1)
    HW = H * W
    itemsize = jnp.dtype(x.dtype).itemsize

    # One-time wrapper-side relayouts so the kernel sees lane-dense operands
    # (jit constants in practice; callers may pre-transpose the params).
    x2 = x.reshape(N, C, HW)                 # free on row-major NCHW
    w1t = jnp.transpose(w1)                  # (C, S)
    w2t = jnp.transpose(w2)                  # (S, C)
    b1r = b1.reshape(1, S)
    b2r = b2.reshape(1, C)

    w_itemsize = jnp.dtype(w1.dtype).itemsize
    w_bytes = (w1.size + b1.size + w2.size + b2.size) * w_itemsize

    # Generation-aware VMEM budget (v7x: 64 MiB physical; v5e/v6e: 128 MiB).
    vmem_cap = _tpu_vmem_capacity_bytes()
    usable = max(16 << 20, vmem_cap - (12 << 20))       # leave headroom
    gen_target = (7 << 20) if vmem_cap <= (64 << 20) else (8 << 20)
    # Hard per-block cap so double-buffered in + out x blocks plus the
    # resident weights fit within the usable VMEM.
    hard_max_block = max(0, (usable - 2 * w_bytes - (2 << 20)) // 4)
    per_batch_bytes = C * HW * itemsize

    cost = pl.CostEstimate(
        flops=2 * N * (C * S + S * C) + 2 * N * C * HW,
        transcendentals=N * C,
        bytes_accessed=2 * N * C * HW * itemsize + 2 * w_bytes,
    )
    io_alias = {0: 0} if donate_x else {}

    if per_batch_bytes <= hard_max_block and not force_split:
        # --------------------------- fused single pass ---------------------
        target = min(max(gen_target, per_batch_bytes), hard_max_block)
        nb = _pick_batch_block(N, per_batch_bytes, target)
        block_bytes = nb * per_batch_bytes
        vmem_limit = int(min(usable,
                             max(32 << 20,
                                 4 * block_bytes + 2 * w_bytes + (2 << 20))))

        def build_fused(single_buffer_weights):
            wspec = _weight_spec if single_buffer_weights else _default_spec
            return pl.pallas_call(
                se_fused_kernel,
                out_shape=jax.ShapeDtypeStruct((N, C, HW), x.dtype),
                grid_spec=pltpu.PrefetchScalarGridSpec(
                    num_scalar_prefetch=0,
                    grid=(N // nb,),
                    in_specs=[
                        pl.BlockSpec((nb, C, HW), lambda n: (n, 0, 0)),
                        wspec((C, S), lambda n: (0, 0)),
                        wspec((1, S), lambda n: (0, 0)),
                        wspec((S, C), lambda n: (0, 0)),
                        wspec((1, C), lambda n: (0, 0)),
                    ],
                    out_specs=pl.BlockSpec((nb, C, HW), lambda n: (n, 0, 0)),
                ),
                compiler_params=pltpu.CompilerParams(
                    dimension_semantics=("parallel",),
                    vmem_limit_bytes=vmem_limit,
                ),
                cost_estimate=cost,
                input_output_aliases=io_alias,
            )(x2, w1t, b1r, w2t, b2r)

        out = _try_single_buffered(build_fused)
        return out.reshape(N, C, H, W)

    # -------------- fallback: HW-tiled gate + HW-tiled scale ----------------
    # One extra HBM read of x (~1.5x traffic) but every pass stays lane-dense
    # and pipelined; the only option when a single batch's (C, HW) block does
    # not fit double-buffered inside VMEM (e.g. big spatial maps on v7x).
    t_hw = _pick_hw_tile(HW, C * itemsize,
                         min(gen_target, max(1 << 20, hard_max_block)))
    n_hw = HW // t_hw
    block_bytes = C * t_hw * itemsize
    vmem_limit = int(min(usable,
                         max(32 << 20,
                             4 * block_bytes + 2 * w_bytes + (2 << 20))))

    def build_gate(single_buffer_weights):
        wspec = _weight_spec if single_buffer_weights else _default_spec
        return pl.pallas_call(
            functools.partial(se_gate_kernel, inv_hw=1.0 / HW),
            out_shape=jax.ShapeDtypeStruct((N, C, 1), jnp.float32),
            grid_spec=pltpu.PrefetchScalarGridSpec(
                num_scalar_prefetch=0,
                grid=(N, n_hw),
                in_specs=[
                    pl.BlockSpec((1, C, t_hw), lambda n, h: (n, 0, h)),
                    wspec((C, S), lambda n, h: (0, 0)),
                    wspec((1, S), lambda n, h: (0, 0)),
                    wspec((S, C), lambda n, h: (0, 0)),
                    wspec((1, C), lambda n, h: (0, 0)),
                ],
                out_specs=pl.BlockSpec((1, C, 1), lambda n, h: (n, 0, 0)),
                scratch_shapes=[pltpu.VMEM((1, C), jnp.float32)],
            ),
            compiler_params=pltpu.CompilerParams(
                dimension_semantics=("parallel", "arbitrary"),
                vmem_limit_bytes=vmem_limit,
            ),
            cost_estimate=pl.CostEstimate(
                flops=2 * N * (C * S + S * C) + N * C * HW,
                transcendentals=N * C,
                bytes_accessed=N * C * HW * itemsize + w_bytes,
            ),
        )(x2, w1t, b1r, w2t, b2r)

    gate = _try_single_buffered(build_gate)        # (N, C, 1) float32

    out = pl.pallas_call(
        se_scale_kernel,
        out_shape=jax.ShapeDtypeStruct((N, C, HW), x.dtype),
        grid_spec=pltpu.PrefetchScalarGridSpec(
            num_scalar_prefetch=0,
            grid=(N, n_hw),
            in_specs=[
                pl.BlockSpec((1, C, t_hw), lambda n, h: (n, 0, h)),
                pl.BlockSpec((1, C, 1), lambda n, h: (n, 0, 0)),
            ],
            out_specs=pl.BlockSpec((1, C, t_hw), lambda n, h: (n, 0, h)),
        ),
        compiler_params=pltpu.CompilerParams(
            dimension_semantics=("parallel", "parallel"),
            vmem_limit_bytes=vmem_limit,
        ),
        cost_estimate=cost,
        input_output_aliases=io_alias,
    )(x2, gate)
    return out.reshape(N, C, H, W)


def squeeze_excitation_ref(x, w1, b1, w2, b2):
    pooled = jnp.mean(x, axis=(2, 3))                      # (N, C)
    s = jnp.maximum(pooled @ w1.T + b1[:, 0], 0.0)         # (N, S)
    g = jax.nn.sigmoid(s @ w2.T + b2[:, 0])                # (N, C)
    return x * g[:, :, None, None]


if __name__ == "__main__":
    key = jax.random.PRNGKey(0)
    N, C, H, W = 2, 4, 16, 16
    squeeze_factor = 4
    S = max(make_divisible(C // squeeze_factor, 8), 32)    # -> 32

    k_x, k_w1, k_b1, k_w2, k_b2 = jax.random.split(key, 5)
    x = jax.random.normal(k_x, (N, C, H, W), dtype=jnp.float32)
    w1 = jax.random.normal(k_w1, (S, C), dtype=jnp.float32) * 0.1
    b1 = jax.random.normal(k_b1, (S, 1), dtype=jnp.float32) * 0.1
    w2 = jax.random.normal(k_w2, (C, S), dtype=jnp.float32) * 0.1
    b2 = jax.random.normal(k_b2, (C, 1), dtype=jnp.float32) * 0.1

    ref = squeeze_excitation_ref(x, w1, b1, w2, b2)

    # Default (fused) path.
    out = jax.block_until_ready(squeeze_excitation(x, w1, b1, w2, b2))
    assert out.shape == (N, C, H, W)
    assert jnp.allclose(out, ref, atol=1e-5, rtol=1e-5), "fused path mismatch"

    # Also exercise the large-activation fallback (HW-tiled gate + scale).
    out_split = jax.block_until_ready(
        squeeze_excitation(x, w1, b1, w2, b2, force_split=True))
    assert jnp.allclose(out_split, ref, atol=1e-5, rtol=1e-5), "split path mismatch"

    print("KERNEL_OK")
</pallas_src>

<mosaic_0001>
module attributes {stable_mosaic.version = 11 : i64} {
  func.func @se_fused_kernel(%arg0: i32, %arg1: memref<1x4x256xf32, #tpu.memory_space<vmem>>, %arg2: memref<4x32xf32, #tpu.memory_space<vmem>>, %arg3: memref<1x32xf32, #tpu.memory_space<vmem>>, %arg4: memref<32x4xf32, #tpu.memory_space<vmem>>, %arg5: memref<1x4xf32, #tpu.memory_space<vmem>>, %arg6: memref<1x4x256xf32, #tpu.memory_space<vmem>>) attributes {dimension_semantics = [#tpu.dimension_semantics<parallel>], iteration_bounds = array<i64: 2>, scalar_prefetch = 0 : i64, scratch_operands = 0 : i64, tpu.core_type = #tpu.core_type<tc>, window_params = [{transform_indices = @transform_0, window_bounds = array<i64: 1, 4, 256>}, {pipeline_mode = #tpu.pipeline_mode<synchronous>, transform_indices = @transform_1, window_bounds = array<i64: 4, 32>}, {pipeline_mode = #tpu.pipeline_mode<synchronous>, transform_indices = @transform_2, window_bounds = array<i64: 1, 32>}, {pipeline_mode = #tpu.pipeline_mode<synchronous>, transform_indices = @transform_3, window_bounds = array<i64: 32, 4>}, {pipeline_mode = #tpu.pipeline_mode<synchronous>, transform_indices = @transform_4, window_bounds = array<i64: 1, 4>}, {transform_indices = @transform_5, window_bounds = array<i64: 1, 4, 256>}]} {
    %c0 = arith.constant 0 : index
    %c0_0 = arith.constant 0 : index
    %c0_1 = arith.constant 0 : index
    %0 = vector.load %arg1[%c0, %c0_0, %c0_1] : memref<1x4x256xf32, #tpu.memory_space<vmem>>, vector<1x4x256xf32>
    %cst = arith.constant dense<0.000000e+00> : vector<1x4xf32>
    %1 = vector.multi_reduction <add>, %0, %cst [2] : vector<1x4x256xf32> to vector<1x4xf32>
    %cst_2 = arith.constant 2.560000e+02 : f32
    %2 = vector.broadcast %cst_2 : f32 to vector<1x4xf32>
    %3 = arith.divf %1, %2 : vector<1x4xf32>
    %c0_3 = arith.constant 0 : index
    %c0_4 = arith.constant 0 : index
    %4 = vector.load %arg2[%c0_3, %c0_4] : memref<4x32xf32, #tpu.memory_space<vmem>>, vector<4x32xf32>
    %cst_5 = arith.constant dense<0.000000e+00> : vector<1x32xf32>
    %5 = tpu.matmul %3, %4, %cst_5 {dimension_numbers = #tpu.dot_dimension_numbers<[1], [0], [0], [1], [0, 0, 1, 1], [], []>} : vector<1x4xf32>, vector<4x32xf32>, vector<1x32xf32> -> vector<1x32xf32>
    %c0_6 = arith.constant 0 : index
    %c0_7 = arith.constant 0 : index
    %6 = vector.load %arg3[%c0_6, %c0_7] : memref<1x32xf32, #tpu.memory_space<vmem>>, vector<1x32xf32>
    %7 = arith.addf %5, %6 : vector<1x32xf32>
    %cst_8 = arith.constant 0.000000e+00 : f32
    %8 = vector.broadcast %cst_8 : f32 to vector<1x32xf32>
    %9 = arith.maximumf %7, %8 : vector<1x32xf32>
    %c0_9 = arith.constant 0 : index
    %c0_10 = arith.constant 0 : index
    %10 = vector.load %arg4[%c0_9, %c0_10] : memref<32x4xf32, #tpu.memory_space<vmem>>, vector<32x4xf32>
    %cst_11 = arith.constant dense<0.000000e+00> : vector<1x4xf32>
    %11 = tpu.matmul %9, %10, %cst_11 {dimension_numbers = #tpu.dot_dimension_numbers<[1], [0], [0], [1], [0, 0, 1, 1], [], []>} : vector<1x32xf32>, vector<32x4xf32>, vector<1x4xf32> -> vector<1x4xf32>
    %c0_12 = arith.constant 0 : index
    %c0_13 = arith.constant 0 : index
    %12 = vector.load %arg5[%c0_12, %c0_13] : memref<1x4xf32, #tpu.memory_space<vmem>>, vector<1x4xf32>
    %13 = arith.addf %11, %12 : vector<1x4xf32>
    %14 = arith.negf %13 : vector<1x4xf32>
    %15 = math.exp %14 : vector<1x4xf32>
    %cst_14 = arith.constant 1.000000e+00 : f32
    %16 = vector.broadcast %cst_14 : f32 to vector<1x4xf32>
    %17 = arith.addf %16, %15 : vector<1x4xf32>
    %18 = arith.divf %16, %17 : vector<1x4xf32>
    %c0_15 = arith.constant 0 : index
    %c0_16 = arith.constant 0 : index
    %c0_17 = arith.constant 0 : index
    %19 = vector.load %arg1[%c0_15, %c0_16, %c0_17] : memref<1x4x256xf32, #tpu.memory_space<vmem>>, vector<1x4x256xf32>
    %20 = vector.shape_cast %18 : vector<1x4xf32> to vector<1x4x1xf32>
    %21 = vector.broadcast %20 : vector<1x4x1xf32> to vector<1x4x256xf32>
    %22 = arith.mulf %19, %21 : vector<1x4x256xf32>
    %c0_18 = arith.constant 0 : index
    %c0_19 = arith.constant 0 : index
    %c0_20 = arith.constant 0 : index
    %23 = vector.load %arg6[%c0_18, %c0_19, %c0_20] : memref<1x4x256xf32, #tpu.memory_space<vmem>>, vector<1x4x256xf32>
    tpu.vector_store %arg6[%c0_18, %c0_19, %c0_20], %22 {strides = array<i32>} : memref<1x4x256xf32, #tpu.memory_space<vmem>>, vector<1x4x256xf32>,
    return
  }
  func.func @transform_0(%arg0: i32) -> (i32, i32, i32) {
    %c0_i32 = arith.constant 0 : i32
    %c0_i32_0 = arith.constant 0 : i32
    %c0_i32_1 = arith.constant 0 : i32
    return %arg0, %c0_i32, %c0_i32_0 : i32, i32, i32
  }
  func.func @transform_1(%arg0: i32) -> (i32, i32) {
    %c0_i32 = arith.constant 0 : i32
    %c0_i32_0 = arith.constant 0 : i32
    %c0_i32_1 = arith.constant 0 : i32
    return %c0_i32, %c0_i32_0 : i32, i32
  }
  func.func @transform_2(%arg0: i32) -> (i32, i32) {
    %c0_i32 = arith.constant 0 : i32
    %c0_i32_0 = arith.constant 0 : i32
    %c0_i32_1 = arith.constant 0 : i32
    return %c0_i32, %c0_i32_0 : i32, i32
  }
  func.func @transform_3(%arg0: i32) -> (i32, i32) {
    %c0_i32 = arith.constant 0 : i32
    %c0_i32_0 = arith.constant 0 : i32
    %c0_i32_1 = arith.constant 0 : i32
    return %c0_i32, %c0_i32_0 : i32, i32
  }
  func.func @transform_4(%arg0: i32) -> (i32, i32) {
    %c0_i32 = arith.constant 0 : i32
    %c0_i32_0 = arith.constant 0 : i32
    %c0_i32_1 = arith.constant 0 : i32
    return %c0_i32, %c0_i32_0 : i32, i32
  }
  func.func @transform_5(%arg0: i32) -> (i32, i32, i32) {
    %c0_i32 = arith.constant 0 : i32
    %c0_i32_0 = arith.constant 0 : i32
    %c0_i32_1 = arith.constant 0 : i32
    return %arg0, %c0_i32, %c0_i32_0 : i32, i32, i32
  }
}

module attributes {stable_mosaic.version = 11 : i64} {
  func.func @se_fused_kernel(%arg0: i32, %arg1: memref<1x4x256xf32, #tpu.memory_space<vmem>>, %arg2: memref<4x32xf32, #tpu.memory_space<vmem>>, %arg3: memref<1x32xf32, #tpu.memory_space<vmem>>, %arg4: memref<32x4xf32, #tpu.memory_space<vmem>>, %arg5: memref<1x4xf32, #tpu.memory_space<vmem>>, %arg6: memref<1x4x256xf32, #tpu.memory_space<vmem>>) attributes {dimension_semantics = [#tpu.dimension_semantics<parallel>], iteration_bounds = array<i64: 2>, scalar_prefetch = 0 : i64, scratch_operands = 0 : i64, tpu.core_type = #tpu.core_type<tc>, window_params = [{transform_indices = @transform_0, window_bounds = array<i64: 1, 4, 256>}, {pipeline_mode = #tpu.pipeline_mode<synchronous>, transform_indices = @transform_1, window_bounds = array<i64: 4, 32>}, {pipeline_mode = #tpu.pipeline_mode<synchronous>, transform_indices = @transform_2, window_bounds = array<i64: 1, 32>}, {pipeline_mode = #tpu.pipeline_mode<synchronous>, transform_indices = @transform_3, window_bounds = array<i64: 32, 4>}, {pipeline_mode = #tpu.pipeline_mode<synchronous>, transform_indices = @transform_4, window_bounds = array<i64: 1, 4>}, {transform_indices = @transform_5, window_bounds = array<i64: 1, 4, 256>}]} {
    %c0 = arith.constant 0 : index
    %c0_0 = arith.constant 0 : index
    %c0_1 = arith.constant 0 : index
    %0 = vector.load %arg1[%c0, %c0_0, %c0_1] : memref<1x4x256xf32, #tpu.memory_space<vmem>>, vector<1x4x256xf32>
    %cst = arith.constant dense<0.000000e+00> : vector<1x4xf32>
    %1 = vector.multi_reduction <add>, %0, %cst [2] : vector<1x4x256xf32> to vector<1x4xf32>
    %cst_2 = arith.constant 2.560000e+02 : f32
    %2 = vector.broadcast %cst_2 : f32 to vector<1x4xf32>
    %3 = arith.divf %1, %2 : vector<1x4xf32>
    %c0_3 = arith.constant 0 : index
    %c0_4 = arith.constant 0 : index
    %4 = vector.load %arg2[%c0_3, %c0_4] : memref<4x32xf32, #tpu.memory_space<vmem>>, vector<4x32xf32>
    %cst_5 = arith.constant dense<0.000000e+00> : vector<1x32xf32>
    %5 = tpu.matmul %3, %4, %cst_5 {dimension_numbers = #tpu.dot_dimension_numbers<[1], [0], [0], [1], [0, 0, 1, 1], [], []>} : vector<1x4xf32>, vector<4x32xf32>, vector<1x32xf32> -> vector<1x32xf32>
    %c0_6 = arith.constant 0 : index
    %c0_7 = arith.constant 0 : index
    %6 = vector.load %arg3[%c0_6, %c0_7] : memref<1x32xf32, #tpu.memory_space<vmem>>, vector<1x32xf32>
    %7 = arith.addf %5, %6 : vector<1x32xf32>
    %cst_8 = arith.constant 0.000000e+00 : f32
    %8 = vector.broadcast %cst_8 : f32 to vector<1x32xf32>
    %9 = arith.maximumf %7, %8 : vector<1x32xf32>
    %c0_9 = arith.constant 0 : index
    %c0_10 = arith.constant 0 : index
    %10 = vector.load %arg4[%c0_9, %c0_10] : memref<32x4xf32, #tpu.memory_space<vmem>>, vector<32x4xf32>
    %cst_11 = arith.constant dense<0.000000e+00> : vector<1x4xf32>
    %11 = tpu.matmul %9, %10, %cst_11 {dimension_numbers = #tpu.dot_dimension_numbers<[1], [0], [0], [1], [0, 0, 1, 1], [], []>} : vector<1x32xf32>, vector<32x4xf32>, vector<1x4xf32> -> vector<1x4xf32>
    %c0_12 = arith.constant 0 : index
    %c0_13 = arith.constant 0 : index
    %12 = vector.load %arg5[%c0_12, %c0_13] : memref<1x4xf32, #tpu.memory_space<vmem>>, vector<1x4xf32>
    %13 = arith.addf %11, %12 : vector<1x4xf32>
    %14 = arith.negf %13 : vector<1x4xf32>
    %15 = math.exp %14 : vector<1x4xf32>
    %cst_14 = arith.constant 1.000000e+00 : f32
    %16 = vector.broadcast %cst_14 : f32 to vector<1x4xf32>
    %17 = arith.addf %16, %15 : vector<1x4xf32>
    %18 = arith.divf %16, %17 : vector<1x4xf32>
    %c0_15 = arith.constant 0 : index
    %c0_16 = arith.constant 0 : index
    %c0_17 = arith.constant 0 : index
    %19 = vector.load %arg1[%c0_15, %c0_16, %c0_17] : memref<1x4x256xf32, #tpu.memory_space<vmem>>, vector<1x4x256xf32>
    %20 = vector.shape_cast %18 : vector<1x4xf32> to vector<1x4x1xf32>
    %21 = vector.broadcast %20 : vector<1x4x1xf32> to vector<1x4x256xf32>
    %22 = arith.mulf %19, %21 : vector<1x4x256xf32>
    %c0_18 = arith.constant 0 : index
    %c0_19 = arith.constant 0 : index
    %c0_20 = arith.constant 0 : index
    %23 = vector.load %arg6[%c0_18, %c0_19, %c0_20] : memref<1x4x256xf32, #tpu.memory_space<vmem>>, vector<1x4x256xf32>
    tpu.vector_store %arg6[%c0_18, %c0_19, %c0_20], %22 {strides = array<i32>} : memref<1x4x256xf32, #tpu.memory_space<vmem>>, vector<1x4x256xf32>,
    return
  }
  func.func @transform_0(%arg0: i32) -> (i32, i32, i32) {
    %c0_i32 = arith.constant 0 : i32
    %c0_i32_0 = arith.constant 0 : i32
    %c0_i32_1 = arith.constant 0 : i32
    return %arg0, %c0_i32, %c0_i32_0 : i32, i32, i32
  }
  func.func @transform_1(%arg0: i32) -> (i32, i32) {
    %c0_i32 = arith.constant 0 : i32
    %c0_i32_0 = arith.constant 0 : i32
    %c0_i32_1 = arith.constant 0 : i32
    return %c0_i32, %c0_i32_0 : i32, i32
  }
  func.func @transform_2(%arg0: i32) -> (i32, i32) {
    %c0_i32 = arith.constant 0 : i32
    %c0_i32_0 = arith.constant 0 : i32
    %c0_i32_1 = arith.constant 0 : i32
    return %c0_i32, %c0_i32_0 : i32, i32
  }
  func.func @transform_3(%arg0: i32) -> (i32, i32) {
    %c0_i32 = arith.constant 0 : i32
    %c0_i32_0 = arith.constant 0 : i32
    %c0_i32_1 = arith.constant 0 : i32
    return %c0_i32, %c0_i32_0 : i32, i32
  }
  func.func @transform_4(%arg0: i32) -> (i32, i32) {
    %c0_i32 = arith.constant 0 : i32
    %c0_i32_0 = arith.constant 0 : i32
    %c0_i32_1 = arith.constant 0 : i32
    return %c0_i32, %c0_i32_0 : i32, i32
  }
  func.func @transform_5(%arg0: i32) -> (i32, i32, i32) {
    %c0_i32 = arith.constant 0 : i32
    %c0_i32_0 = arith.constant 0 : i32
    %c0_i32_1 = arith.constant 0 : i32
    return %arg0, %c0_i32, %c0_i32_0 : i32, i32, i32
  }
}

</mosaic_0001>

<llo_original>
// kernel: tpu_custom_call.1
$region0: #{tpu_custom_call.1}
  #allocation0 [shape = 'u32[]', space=smem, size = 0x4, offset = 0x4, fixed_abs, tag = 'smem constant byte address 0x4 - core index']
  #allocation1 [shape = 'u32[144,128]{1,0:T(1,128)}', space=vmem, size = 0x12000, scoped, tag = 'internal scratch']
  %s0 = inlined_call_operand.vmem [shape: f32[2,4,256], index: 0, kind: input, shape index: {}]
  %s1 = inlined_call_operand.vmem [shape: f32[4,32], index: 1, kind: input, shape index: {}]
  %s2 = inlined_call_operand.vmem [shape: f32[1,32], index: 2, kind: input, shape index: {}]
  %s3 = inlined_call_operand.vmem [shape: f32[32,4], index: 3, kind: input, shape index: {}]
  %s4 = inlined_call_operand.vmem [shape: f32[1,4], index: 4, kind: input, shape index: {}]
  %s5 = inlined_call_operand.hbm [shape: f32[2,4,256], index: 5, kind: output, shape index: {}]
  %s6 = sld [smem:[#allocation0]]
  $region53: #{tpu_custom_call.1} parent=0
    _
  %s8 = ssub.s32 1, %s6
  %s9 = scalar_select 0, %s8, %s6
  $region1: #{tpu_custom_call.1} parent=0
    #allocation2 [shape = 'u8[8192]{0}', space=vmem, size = 0x2000, scoped, tag = 'output window, operand 0']
    #allocation3 [shape = 's32[2]{0}', space=sflag, size = 0x8, scoped, tag = 'scoped memory for tpu_custom_call.1']
    %10 = vsyncpa [#allocation3], 0
    %s11 = scalar_lea.sflag [#allocation3], 1
    %12 = vsyncpa %s11, 0
    loop: start=0, step=1, limit=4
    $region2: #{tpu_custom_call.1} parent=1 // loop_pre_header
      _
    $region3: #{tpu_custom_call.1} parent=1 // loop_header
      %s14 = sphi 0, %s18
      %p15 = scmp.ge.s32.totalorder %s14, 4
      %s24 = sphi 0, %s26
      %s27 = sphi 0, %s24
      %s28 = sphi 0, %s27
      %s44 = sphi 0, %s28
      %s48 = sphi 0, %s48
      %s50 = sphi 0, %s48
      %s51 = sphi 0, %s50
      %s65 = sphi 0, %s51
      %s69 = sphi 0, %s69
      %s71 = sphi 0, %s69
      %s72 = sphi 0, %s71
      %s86 = sphi 0, %s72
      %s90 = sphi 0, %s90
      %s92 = sphi 0, %s90
      %s93 = sphi 0, %s92
      %s107 = sphi 0, %s93
      %s111 = sphi 0, %s111
      %s113 = sphi 0, %s111
      %s114 = sphi 0, %s113
      %s128 = sphi 0, %s114
      %s134 = sphi 0, %s136
      %s137 = sphi 0, %s134
      %s138 = sphi 0, %s137
      %s154 = sphi 0, %s138
    $region4: #{tpu_custom_call.1} parent=1 // loop_header_branch
      %17 = sbr.rel (%p15) target = $region8
    $region5: #{tpu_custom_call.1} parent=1 // loop_body
      %s19 = ssub.s32 %s14, 1
      %s20 = ssub.s32 %s14, 2
      %s21 = sadd.s32 %s14, 1
      %s22 = ssub.s32 %s14, %s21
      %p23 = scmp.eq.s32.totalorder %s22, 0
      %s25 = sadd.s32 %s24, 1
      %s26 = scalar_select %p23, %s24, %s25
      %p29 = pneg %p23
      %p30 = scmp.eq.s32.totalorder %s14, 1
      %p31 = por %p29, %p30
      %p32 = scmp.ne.s32.totalorder %s24, %s27
      %p33 = scmp.eq.s32.totalorder %s14, 0
      %p34 = por %p32, %p33
      %p35 = scmp.ne.s32.totalorder %s24, %s27
      %p36 = scmp.eq.s32.totalorder %s19, 1
      %p37 = por %p35, %p36
      %p38 = scmp.ne.s32.totalorder %s27, %s28
      %p39 = scmp.eq.s32.totalorder %s19, 0
      %p40 = por %p38, %p39
      %p41 = scmp.ne.s32.totalorder %s27, %s28
      %p42 = scmp.eq.s32.totalorder %s20, 1
      %p43 = por %p41, %p42
      %p45 = scmp.ne.s32.totalorder %s28, %s44
      %p46 = scmp.eq.s32.totalorder %s20, 0
      %p47 = por %p45, %p46
      %s49 = sadd.s32 %s48, 1
      %p52 = scmp.eq.s32.totalorder %s14, 1
      %p53 = scmp.ne.s32.totalorder %s48, %s50
      %p54 = scmp.eq.s32.totalorder %s14, 0
      %p55 = por %p53, %p54
      %p56 = scmp.ne.s32.totalorder %s48, %s50
      %p57 = scmp.eq.s32.totalorder %s19, 1
      %p58 = por %p56, %p57
      %p59 = scmp.ne.s32.totalorder %s50, %s51
      %p60 = scmp.eq.s32.totalorder %s19, 0
      %p61 = por %p59, %p60
      %p62 = scmp.ne.s32.totalorder %s50, %s51
      %p63 = scmp.eq.s32.totalorder %s20, 1
      %p64 = por %p62, %p63
      %p66 = scmp.ne.s32.totalorder %s51, %s65
      %p67 = scmp.eq.s32.totalorder %s20, 0
      %p68 = por %p66, %p67
      %s70 = sadd.s32 %s69, 1
      %p73 = scmp.eq.s32.totalorder %s14, 1
      %p74 = scmp.ne.s32.totalorder %s69, %s71
      %p75 = scmp.eq.s32.totalorder %s14, 0
      %p76 = por %p74, %p75
      %p77 = scmp.ne.s32.totalorder %s69, %s71
      %p78 = scmp.eq.s32.totalorder %s19, 1
      %p79 = por %p77, %p78
      %p80 = scmp.ne.s32.totalorder %s71, %s72
      %p81 = scmp.eq.s32.totalorder %s19, 0
      %p82 = por %p80, %p81
      %p83 = scmp.ne.s32.totalorder %s71, %s72
      %p84 = scmp.eq.s32.totalorder %s20, 1
      %p85 = por %p83, %p84
      %p87 = scmp.ne.s32.totalorder %s72, %s86
      %p88 = scmp.eq.s32.totalorder %s20, 0
      %p89 = por %p87, %p88
      %s91 = sadd.s32 %s90, 1
      %p94 = scmp.eq.s32.totalorder %s14, 1
      %p95 = scmp.ne.s32.totalorder %s90, %s92
      %p96 = scmp.eq.s32.totalorder %s14, 0
      %p97 = por %p95, %p96
      %p98 = scmp.ne.s32.totalorder %s90, %s92
      %p99 = scmp.eq.s32.totalorder %s19, 1
      %p100 = por %p98, %p99
      %p101 = scmp.ne.s32.totalorder %s92, %s93
      %p102 = scmp.eq.s32.totalorder %s19, 0
      %p103 = por %p101, %p102
      %p104 = scmp.ne.s32.totalorder %s92, %s93
      %p105 = scmp.eq.s32.totalorder %s20, 1
      %p106 = por %p104, %p105
      %p108 = scmp.ne.s32.totalorder %s93, %s107
      %p109 = scmp.eq.s32.totalorder %s20, 0
      %p110 = por %p108, %p109
      %s112 = sadd.s32 %s111, 1
      %p115 = scmp.eq.s32.totalorder %s14, 1
      %p116 = scmp.ne.s32.totalorder %s111, %s113
      %p117 = scmp.eq.s32.totalorder %s14, 0
      %p118 = por %p116, %p117
      %p119 = scmp.ne.s32.totalorder %s111, %s113
      %p120 = scmp.eq.s32.totalorder %s19, 1
      %p121 = por %p119, %p120
      %p122 = scmp.ne.s32.totalorder %s113, %s114
      %p123 = scmp.eq.s32.totalorder %s19, 0
      %p124 = por %p122, %p123
      %p125 = scmp.ne.s32.totalorder %s113, %s114
      %p126 = scmp.eq.s32.totalorder %s20, 1
      %p127 = por %p125, %p126
      %p129 = scmp.ne.s32.totalorder %s114, %s128
      %p130 = scmp.eq.s32.totalorder %s20, 0
      %p131 = por %p129, %p130
      %s132 = ssub.s32 %s14, %s21
      %p133 = scmp.eq.s32.totalorder %s132, 0
      %s135 = sadd.s32 %s134, 1
      %s136 = scalar_select %p133, %s134, %s135
      %p139 = pneg %p133
      %p140 = scmp.eq.s32.totalorder %s14, 1
      %p141 = por %p139, %p140
      %p142 = scmp.ne.s32.totalorder %s134, %s137
      %p143 = scmp.eq.s32.totalorder %s14, 0
      %p144 = por %p142, %p143
      %p145 = scmp.ne.s32.totalorder %s134, %s137
      %p146 = scmp.eq.s32.totalorder %s19, 1
      %p147 = por %p145, %p146
      %p148 = scmp.ne.s32.totalorder %s137, %s138
      %p149 = scmp.eq.s32.totalorder %s19, 0
      %p150 = por %p148, %p149
      %p151 = scmp.ne.s32.totalorder %s137, %s138
      %p152 = scmp.eq.s32.totalorder %s20, 1
      %p153 = por %p151, %p152
      %p155 = scmp.ne.s32.totalorder %s138, %s154
      %p156 = scmp.eq.s32.totalorder %s20, 0
      %p157 = por %p155, %p156
      %p158 = scmp.le.s32.totalorder 1, %s14
      %p159 = scmp.lt.s32.totalorder %s14, 3
      %p160 = pnand %p158, %p159
      %p161 = pneg %p160
      // Predicated region
      $region9: #{tpu_custom_call.1} parent=5 // pred_check
        _
      $region10: #{tpu_custom_call.1} parent=5 // pred_check_branch
        %163 = sbr.rel (%p160) target = $region12
      $region11: #{tpu_custom_call.1} parent=5 // pred_region
        %s164 = ssub.s32 %s14, 1
        // Predicated region
        $region13: #{tpu_custom_call.1} parent=11 // pred_check
          %p165 = pneg %p61
        $region14: #{tpu_custom_call.1} parent=11 // pred_check_branch
          %167 = sbr.rel (%p165) target = $region16
        $region15: #{tpu_custom_call.1} parent=11 // pred_region
          _
        $region16: #{tpu_custom_call.1} parent=11 // pred_fallthru
          _
        // Predicated region
        $region17: #{tpu_custom_call.1} parent=11 // pred_check
          %p168 = pneg %p82
        $region18: #{tpu_custom_call.1} parent=11 // pred_check_branch
          %170 = sbr.rel (%p168) target = $region20
        $region19: #{tpu_custom_call.1} parent=11 // pred_region
          _
        $region20: #{tpu_custom_call.1} parent=11 // pred_fallthru
          _
        // Predicated region
        $region21: #{tpu_custom_call.1} parent=11 // pred_check
          %p171 = pneg %p103
        $region22: #{tpu_custom_call.1} parent=11 // pred_check_branch
          %173 = sbr.rel (%p171) target = $region24
        $region23: #{tpu_custom_call.1} parent=11 // pred_region
          _
        $region24: #{tpu_custom_call.1} parent=11 // pred_fallthru
          _
        // Predicated region
        $region25: #{tpu_custom_call.1} parent=11 // pred_check
          %p174 = pneg %p124
        $region26: #{tpu_custom_call.1} parent=11 // pred_check_branch
          %176 = sbr.rel (%p174) target = $region28
        $region27: #{tpu_custom_call.1} parent=11 // pred_region
          _
        $region28: #{tpu_custom_call.1} parent=11 // pred_fallthru
          _
      $region12: #{tpu_custom_call.1} parent=5 // pred_fallthru
        _
      %p177 = scmp.lt.s32.totalorder %s14, 2
      // Predicated region
      $region29: #{tpu_custom_call.1} parent=5 // pred_check
        %p178 = pneg %p177
      $region30: #{tpu_custom_call.1} parent=5 // pred_check_branch
        %180 = sbr.rel (%p178) target = $region32
      $region31: #{tpu_custom_call.1} parent=5 // pred_region
        // Predicated region
        $region33: #{tpu_custom_call.1} parent=31 // pred_check
          %p181 = pneg %p34
        $region34: #{tpu_custom_call.1} parent=31 // pred_check_branch
          %183 = sbr.rel (%p181) target = $region36
        $region35: #{tpu_custom_call.1} parent=31 // pred_region
          %p184 = scmp.lt.s32.totalorder %s14, 1
          %s185 = scalar_select %p184, %s14, 1
          %s186 = smul.addr %s185, 2
          %s187 = smul.addr %s186, 4
          %s188 = scalar_lea.vmem %s0, %s187
        $region36: #{tpu_custom_call.1} parent=31 // pred_fallthru
          _
      $region32: #{tpu_custom_call.1} parent=5 // pred_fallthru
        _
      %p189 = scmp.le.s32.totalorder 1, %s14
      %p190 = scmp.lt.s32.totalorder %s14, 3
      %p191 = pnand %p189, %p190
      %p192 = pneg %p191
      // Predicated region
      $region37: #{tpu_custom_call.1} parent=5 // pred_check
        _
      $region38: #{tpu_custom_call.1} parent=5 // pred_check_branch
        %194 = sbr.rel (%p191) target = $region40
      $region39: #{tpu_custom_call.1} parent=5 // pred_region
        %s195 = ssub.s32 %s14, 1
        %p196 = scmp.lt.s32.totalorder %s19, 1
        %s197 = scalar_select %p196, %s19, 1
        %s198 = smul.addr %s197, 2
        %s199 = smul.addr %s198, 4
        %s200 = scalar_lea.vmem %s0, %s199
        %p201 = pneg %p40
        %p202 = pneg %p37
        %p203 = pneg %p61
        %p204 = pneg %p58
        %p205 = pneg %p82
        %p206 = pneg %p79
        %p207 = pneg %p103
        %p208 = pneg %p100
        %p209 = pneg %p124
        %p210 = pneg %p121
        %p211 = pneg %p150
        %p212 = pneg %p147
        %s213 = sand.u32 %s137, 1
        %s214 = scalar_lea.sflag [#allocation3], %s213
        %s215 = sand.u32 %s137, 1
        %s216 = smul.addr %s215, 8
        %s217 = scalar_lea.vmem [#allocation2], %s216
        %p218 = scmp.lt.s32.totalorder %s19, 1
        %s219 = scalar_select %p218, %s19, 1
        %s220 = smul.addr %s219, 2
        %s221 = smul.addr %s220, 4
        %s222 = scalar_lea.vmem %s0, %s221
        %v223 = vld [vmem:[%s222] sm:$0xff]
        %v225 = vcombine.high %v223, %v223
        %vm227 = vcmask 1043456
        %v228 = vsel %vm227, %v223, 0.0
        %v229 = vsel %vm227, %v225, 0.0
        %v230 = vadd.f32 %v228, %v229
        %231 = vadd.xlane.f32.xlu0 %v230
        %v232 = vpop.xlane.xlu0 %231
        %v233 = vrcp.pop 256.0
        %v234 = vmul.f32 %v232, %v233
        %v235 = vld [vmem:[%s1] sm:$0xf]
        %v236 = vld [vmem:[%s2] sm:$0x1]
        %v238 = vlaneseq
        %v239 = vand.u32 %v238, 127
        %v240 = vlaneseq
        %v241 = vshrl.u32 %v240, 7
        %v242 = vsub.s32 %v239, %v241
        %v243 = vrot.slane %v234, %v242
        %vm244 = vcmask 31744
        %v245 = vsel %vm244, %v243, 0
        %v248 = vsel %vm227, %v235, 0
        %250 = vmatprep.subr.mxu0 0.0
        %251 = vmatpush1.msra.mxu0 %v248
        %252 = vmatprep.subr.mxu0 0.0
        %253 = vmatpush1.msra.mxu0 0.0
        %254 = vmatprep.subr.mxu0 0.0
        %255 = vmatpush1.msra.mxu0 0.0
        %256 = vmatprep.subr.mxu0 0.0
        %257 = vmatpush1.msra.mxu0 0.0
        %258 = vmatprep.subr.mxu0 0.0
        %259 = vmatpush1.msra.mxu0 0.0
        %260 = vmatprep.subr.mxu0 0.0
        %261 = vmatpush1.msra.mxu0 0.0
        %262 = vmatprep.subr.mxu0 0.0
        %263 = vmatpush1.msra.mxu0 0.0
        %264 = vmatprep.subr.mxu0 0.0
        %265 = vmatpush1.msra.mxu0 0.0
        %266 = vmatprep.subr.mxu0 0.0
        %267 = vmatpush1.msra.mxu0 0.0
        %268 = vmatprep.subr.mxu0 0.0
        %269 = vmatpush1.msra.mxu0 0.0
        %270 = vmatprep.subr.mxu0 0.0
        %271 = vmatpush1.msra.mxu0 0.0
        %272 = vmatprep.subr.mxu0 0.0
        %273 = vmatpush1.msra.mxu0 0.0
        %274 = vmatprep.subr.mxu0 0.0
        %275 = vmatpush1.msra.mxu0 0.0
        %276 = vmatprep.subr.mxu0 0.0
        %277 = vmatpush1.msra.mxu0 0.0
        %278 = vmatprep.subr.mxu0 0.0
        %279 = vmatpush1.msra.mxu0 0.0
        %280 = vmatprep.subr.mxu0 0.0
        %281 = vmatpush1.msra.mxu0 0.0
        %282 = vmatprep.subr.mxu0 0.0
        %283 = vmatpush1.msra.mxu0 0.0
        %284 = vmatprep.subr.mxu0 0.0
        %285 = vmatpush1.msra.mxu0 0.0
        %286 = vmatprep.subr.mxu0 0.0
        %287 = vmatpush1.msra.mxu0 0.0
        %288 = vmatprep.subr.mxu0 0.0
        %289 = vmatpush1.msra.mxu0 0.0
        %290 = vmatprep.subr.mxu0 0.0
        %291 = vmatpush1.msra.mxu0 0.0
        %292 = vmatprep.subr.mxu0 0.0
        %293 = vmatpush1.msra.mxu0 0.0
        %294 = vmatprep.subr.mxu0 0.0
        %295 = vmatpush1.msra.mxu0 0.0
        %296 = vmatprep.subr.mxu0 0.0
        %297 = vmatpush1.msra.mxu0 0.0
        %298 = vmatprep.subr.mxu0 0.0
        %299 = vmatpush1.msra.mxu0 0.0
        %300 = vmatprep.subr.mxu0 0.0
        %301 = vmatpush1.msra.mxu0 0.0
        %302 = vmatprep.subr.mxu0 0.0
        %303 = vmatpush1.msra.mxu0 0.0
        %304 = vmatprep.subr.mxu0 0.0
        %305 = vmatpush1.msra.mxu0 0.0
        %306 = vmatprep.subr.mxu0 0.0
        %307 = vmatpush1.msra.mxu0 0.0
        %308 = vmatprep.subr.mxu0 0.0
        %309 = vmatpush1.msra.mxu0 0.0
        %310 = vmatprep.subr.mxu0 0.0
        %311 = vmatpush1.msra.mxu0 0.0
        %312 = vmatprep.subr.mxu0 0.0
        %313 = vmatpush1.msra.mxu0 0.0
        %314 = vmatprep.mubr.f32.mxu0 0.0
        %315 = vmatmul.mubr.f32.gmra.mrb[0].mxu0 %v245
        %v316 = vpop.f32.mrb[0].mxu0
        %v317 = vadd.f32 %v236, %v316
        %v318 = vpop.f32.mrb[0].mxu0
        %319 = vdwg.mxu0
        %v320 = vmax.f32 %v317, 0.0
        %v321 = vld [vmem:[%s3] sm:$0xff]
        %v322 = vld [vmem:[%s3 + $0x8] sm:$0xff]
        %v323 = vld [vmem:[%s3 + $0x10] sm:$0xff]
        %v324 = vld [vmem:[%s3 + $0x18] sm:$0xff]
        %v325 = vld [vmem:[%s4] sm:$0x1]
        %vm326 = vcmask 261120
        %v328 = vsel %vm326, %v320, 0
        %330 = vmatprep.subr.mxu0 0.0
        %331 = vmatpush1.msra.mxu0 %v321
        %332 = vmatprep.subr.mxu0 0.0
        %333 = vmatpush1.msra.mxu0 %v322
        %334 = vmatprep.subr.mxu0 0.0
        %335 = vmatpush1.msra.mxu0 %v323
        %336 = vmatprep.subr.mxu0 0.0
        %337 = vmatpush1.msra.mxu0 %v324
        %338 = vmatprep.subr.mxu0 0.0
        %339 = vmatpush1.msra.mxu0 0.0
        %340 = vmatprep.subr.mxu0 0.0
        %341 = vmatpush1.msra.mxu0 0.0
        %342 = vmatprep.subr.mxu0 0.0
        %343 = vmatpush1.msra.mxu0 0.0
        %344 = vmatprep.subr.mxu0 0.0
        %345 = vmatpush1.msra.mxu0 0.0
        %346 = vmatprep.subr.mxu0 0.0
        %347 = vmatpush1.msra.mxu0 0.0
        %348 = vmatprep.subr.mxu0 0.0
        %349 = vmatpush1.msra.mxu0 0.0
        %350 = vmatprep.subr.mxu0 0.0
        %351 = vmatpush1.msra.mxu0 0.0
        %352 = vmatprep.subr.mxu0 0.0
        %353 = vmatpush1.msra.mxu0 0.0
        %354 = vmatprep.subr.mxu0 0.0
        %355 = vmatpush1.msra.mxu0 0.0
        %356 = vmatprep.subr.mxu0 0.0
        %357 = vmatpush1.msra.mxu0 0.0
        %358 = vmatprep.subr.mxu0 0.0
        %359 = vmatpush1.msra.mxu0 0.0
        %360 = vmatprep.subr.mxu0 0.0
        %361 = vmatpush1.msra.mxu0 0.0
        %362 = vmatprep.subr.mxu0 0.0
        %363 = vmatpush1.msra.mxu0 0.0
        %364 = vmatprep.subr.mxu0 0.0
        %365 = vmatpush1.msra.mxu0 0.0
        %366 = vmatprep.subr.mxu0 0.0
        %367 = vmatpush1.msra.mxu0 0.0
        %368 = vmatprep.subr.mxu0 0.0
        %369 = vmatpush1.msra.mxu0 0.0
        %370 = vmatprep.subr.mxu0 0.0
        %371 = vmatpush1.msra.mxu0 0.0
        %372 = vmatprep.subr.mxu0 0.0
        %373 = vmatpush1.msra.mxu0 0.0
        %374 = vmatprep.subr.mxu0 0.0
        %375 = vmatpush1.msra.mxu0 0.0
        %376 = vmatprep.subr.mxu0 0.0
        %377 = vmatpush1.msra.mxu0 0.0
        %378 = vmatprep.subr.mxu0 0.0
        %379 = vmatpush1.msra.mxu0 0.0
        %380 = vmatprep.subr.mxu0 0.0
        %381 = vmatpush1.msra.mxu0 0.0
        %382 = vmatprep.subr.mxu0 0.0
        %383 = vmatpush1.msra.mxu0 0.0
        %384 = vmatprep.subr.mxu0 0.0
        %385 = vmatpush1.msra.mxu0 0.0
        %386 = vmatprep.subr.mxu0 0.0
        %387 = vmatpush1.msra.mxu0 0.0
        %388 = vmatprep.subr.mxu0 0.0
        %389 = vmatpush1.msra.mxu0 0.0
        %390 = vmatprep.subr.mxu0 0.0
        %391 = vmatpush1.msra.mxu0 0.0
        %392 = vmatprep.subr.mxu0 0.0
        %393 = vmatpush1.msra.mxu0 0.0
        %394 = vmatprep.mubr.f32.mxu0 0.0
        %395 = vmatmul.mubr.f32.gmra.mrb[0].mxu0 %v328
        %v396 = vpop.f32.mrb[0].mxu0
        %v397 = vadd.f32 %v325, %v396
        %v398 = vpop.f32.mrb[0].mxu0
        %399 = vdwg.mxu0
        %v400 = vxor.u32 %v397, 2147483648
        %v401 = vmul.f32 %v400, 1.442695
        %v402 = vpow.pop %v401
        %v403 = vadd.f32 %v402, 1.0
        %v404 = vrcp.pop %v403
        %v405 = vmul.f32 1.0, %v404
        %v406 = vlaneseq
        %v407 = vshrl.u32 %v406, 7
        %v408 = vsub.s32 0, %v407
        %v409 = vrot.slane %v405, %v408
        %411 = vbcast.lane.b32.xlu0 %v409, 256
        %v412 = vpop.permute.xlu0 %411
        %v415 = vunpack.c.l.s4 839922192
        %v416 = vunpack.c.0.s8 %v415
        %v417 = vlaneseq
        %v418 = vshrl.u32 %v417, 7
        %v419 = vsub.s32 %v416, %v418
        %v420 = vrot.slane %v412, %v419
        %v422 = vmul.f32 %v223, %v420
        %423 = vst [vmem:[%s217] sm:$0xff] %v422
        %s424 = sand.u32 %s137, 1
        %s425 = scalar_lea.sflag [#allocation3], %s424
        %s426 = sand.u32 %s137, 1
        %s427 = smul.addr %s426, 8
        %s428 = scalar_lea.vmem [#allocation2], %s427
        // Predicated region
        $region41: #{tpu_custom_call.1} parent=39 // pred_check
          %p429 = pneg %p147
        $region42: #{tpu_custom_call.1} parent=39 // pred_check_branch
          %431 = sbr.rel (%p429) target = $region44
        $region43: #{tpu_custom_call.1} parent=39 // pred_region
          %s433 = ssub.s32 128, 128
          %434 = vsyncadd %s425, %s433
          %s435 = smul.addr %s19, 2
          %s436 = smul.addr %s435, 64
          %s437 = scalar_lea.hbm %s5, %s436
          %s439 = sshll.u32 %s428, 4
          %s440 = int_to_ptr.vmem [resolvable:$true] %s439
          %442 = dma.vmem_to_hbm [thread:$0]  %s440, 128, %s437, %s425
        $region44: #{tpu_custom_call.1} parent=39 // pred_fallthru
          _
      $region40: #{tpu_custom_call.1} parent=5 // pred_fallthru
        _
      %p443 = scmp.le.s32.totalorder 2, %s14
      // Predicated region
      $region45: #{tpu_custom_call.1} parent=5 // pred_check
        %p444 = pneg %p443
      $region46: #{tpu_custom_call.1} parent=5 // pred_check_branch
        %446 = sbr.rel (%p444) target = $region48
      $region47: #{tpu_custom_call.1} parent=5 // pred_region
        %s447 = ssub.s32 %s14, 2
        // Predicated region
        $region49: #{tpu_custom_call.1} parent=47 // pred_check
          %p448 = pneg %p153
        $region50: #{tpu_custom_call.1} parent=47 // pred_check_branch
          %450 = sbr.rel (%p448) target = $region52
        $region51: #{tpu_custom_call.1} parent=47 // pred_region
          %s451 = sand.u32 %s138, 1
          %s452 = scalar_lea.sflag [#allocation3], %s451
          %s453 = sand.u32 %s138, 1
          %s454 = smul.addr %s453, 8
          %s455 = scalar_lea.vmem [#allocation2], %s454
          %456 = dma.done %s452, 128
        $region52: #{tpu_custom_call.1} parent=47 // pred_fallthru
          _
      $region48: #{tpu_custom_call.1} parent=5 // pred_fallthru
        _
    $region6: #{tpu_custom_call.1} parent=1 // loop_footer
      %s18 = sadd.s32 1, %s14
    $region7: #{tpu_custom_call.1} parent=1 // loop_footer_branch
      %13 = sbr.rel target = $region3
    $region8: #{tpu_custom_call.1} parent=1 // loop_exit
      _
    %457 = vsyncpa [#allocation3], 1
    %s458 = scalar_lea.sflag [#allocation3], 1
    %459 = vsyncpa %s458, 1

// kernel: tpu_custom_call.1
$region0: #{tpu_custom_call.1}
  #allocation0 [shape = 'u32[]', space=smem, size = 0x4, offset = 0x4, fixed_abs, tag = 'smem constant byte address 0x4 - core index']
  #allocation1 [shape = 'u32[144,128]{1,0:T(1,128)}', space=vmem, size = 0x12000, scoped, tag = 'internal scratch']
  %s0 = inlined_call_operand.vmem [shape: f32[2,4,256], index: 0, kind: input, shape index: {}]
  %s1 = inlined_call_operand.vmem [shape: f32[4,32], index: 1, kind: input, shape index: {}]
  %s2 = inlined_call_operand.vmem [shape: f32[1,32], index: 2, kind: input, shape index: {}]
  %s3 = inlined_call_operand.vmem [shape: f32[32,4], index: 3, kind: input, shape index: {}]
  %s4 = inlined_call_operand.vmem [shape: f32[1,4], index: 4, kind: input, shape index: {}]
  %s5 = inlined_call_operand.hbm [shape: f32[2,4,256], index: 5, kind: output, shape index: {}]
  %s6 = sld [smem:[#allocation0]]
  $region53: #{tpu_custom_call.1} parent=0
    _
  %s8 = ssub.s32 1, %s6
  %s9 = scalar_select 0, %s8, %s6
  $region1: #{tpu_custom_call.1} parent=0
    #allocation2 [shape = 'u8[8192]{0}', space=vmem, size = 0x2000, scoped, tag = 'output window, operand 0']
    #allocation3 [shape = 's32[2]{0}', space=sflag, size = 0x8, scoped, tag = 'scoped memory for tpu_custom_call.1']
    %10 = vsyncpa [#allocation3], 0
    %s11 = scalar_lea.sflag [#allocation3], 1
    %12 = vsyncpa %s11, 0
    loop: start=0, step=1, limit=4
    $region2: #{tpu_custom_call.1} parent=1 // loop_pre_header
      _
    $region3: #{tpu_custom_call.1} parent=1 // loop_header
      %s14 = sphi 0, %s18
      %p15 = scmp.ge.s32.totalorder %s14, 4
      %s24 = sphi 0, %s26
      %s27 = sphi 0, %s24
      %s28 = sphi 0, %s27
      %s44 = sphi 0, %s28
      %s48 = sphi 0, %s48
      %s50 = sphi 0, %s48
      %s51 = sphi 0, %s50
      %s65 = sphi 0, %s51
      %s69 = sphi 0, %s69
      %s71 = sphi 0, %s69
      %s72 = sphi 0, %s71
      %s86 = sphi 0, %s72
      %s90 = sphi 0, %s90
      %s92 = sphi 0, %s90
      %s93 = sphi 0, %s92
      %s107 = sphi 0, %s93
      %s111 = sphi 0, %s111
      %s113 = sphi 0, %s111
      %s114 = sphi 0, %s113
      %s128 = sphi 0, %s114
      %s134 = sphi 0, %s136
      %s137 = sphi 0, %s134
      %s138 = sphi 0, %s137
      %s154 = sphi 0, %s138
    $region4: #{tpu_custom_call.1} parent=1 // loop_header_branch
      %17 = sbr.rel (%p15) target = $region8
    $region5: #{tpu_custom_call.1} parent=1 // loop_body
      %s19 = ssub.s32 %s14, 1
      %s20 = ssub.s32 %s14, 2
      %s21 = sadd.s32 %s14, 1
      %s22 = ssub.s32 %s14, %s21
      %p23 = scmp.eq.s32.totalorder %s22, 0
      %s25 = sadd.s32 %s24, 1
      %s26 = scalar_select %p23, %s24, %s25
      %p29 = pneg %p23
      %p30 = scmp.eq.s32.totalorder %s14, 1
      %p31 = por %p29, %p30
      %p32 = scmp.ne.s32.totalorder %s24, %s27
      %p33 = scmp.eq.s32.totalorder %s14, 0
      %p34 = por %p32, %p33
      %p35 = scmp.ne.s32.totalorder %s24, %s27
      %p36 = scmp.eq.s32.totalorder %s19, 1
      %p37 = por %p35, %p36
      %p38 = scmp.ne.s32.totalorder %s27, %s28
      %p39 = scmp.eq.s32.totalorder %s19, 0
      %p40 = por %p38, %p39
      %p41 = scmp.ne.s32.totalorder %s27, %s28
      %p42 = scmp.eq.s32.totalorder %s20, 1
      %p43 = por %p41, %p42
      %p45 = scmp.ne.s32.totalorder %s28, %s44
      %p46 = scmp.eq.s32.totalorder %s20, 0
      %p47 = por %p45, %p46
      %s49 = sadd.s32 %s48, 1
      %p52 = scmp.eq.s32.totalorder %s14, 1
      %p53 = scmp.ne.s32.totalorder %s48, %s50
      %p54 = scmp.eq.s32.totalorder %s14, 0
      %p55 = por %p53, %p54
      %p56 = scmp.ne.s32.totalorder %s48, %s50
      %p57 = scmp.eq.s32.totalorder %s19, 1
      %p58 = por %p56, %p57
      %p59 = scmp.ne.s32.totalorder %s50, %s51
      %p60 = scmp.eq.s32.totalorder %s19, 0
      %p61 = por %p59, %p60
      %p62 = scmp.ne.s32.totalorder %s50, %s51
      %p63 = scmp.eq.s32.totalorder %s20, 1
      %p64 = por %p62, %p63
      %p66 = scmp.ne.s32.totalorder %s51, %s65
      %p67 = scmp.eq.s32.totalorder %s20, 0
      %p68 = por %p66, %p67
      %s70 = sadd.s32 %s69, 1
      %p73 = scmp.eq.s32.totalorder %s14, 1
      %p74 = scmp.ne.s32.totalorder %s69, %s71
      %p75 = scmp.eq.s32.totalorder %s14, 0
      %p76 = por %p74, %p75
      %p77 = scmp.ne.s32.totalorder %s69, %s71
      %p78 = scmp.eq.s32.totalorder %s19, 1
      %p79 = por %p77, %p78
      %p80 = scmp.ne.s32.totalorder %s71, %s72
      %p81 = scmp.eq.s32.totalorder %s19, 0
      %p82 = por %p80, %p81
      %p83 = scmp.ne.s32.totalorder %s71, %s72
      %p84 = scmp.eq.s32.totalorder %s20, 1
      %p85 = por %p83, %p84
      %p87 = scmp.ne.s32.totalorder %s72, %s86
      %p88 = scmp.eq.s32.totalorder %s20, 0
      %p89 = por %p87, %p88
      %s91 = sadd.s32 %s90, 1
      %p94 = scmp.eq.s32.totalorder %s14, 1
      %p95 = scmp.ne.s32.totalorder %s90, %s92
      %p96 = scmp.eq.s32.totalorder %s14, 0
      %p97 = por %p95, %p96
      %p98 = scmp.ne.s32.totalorder %s90, %s92
      %p99 = scmp.eq.s32.totalorder %s19, 1
      %p100 = por %p98, %p99
      %p101 = scmp.ne.s32.totalorder %s92, %s93
      %p102 = scmp.eq.s32.totalorder %s19, 0
      %p103 = por %p101, %p102
      %p104 = scmp.ne.s32.totalorder %s92, %s93
      %p105 = scmp.eq.s32.totalorder %s20, 1
      %p106 = por %p104, %p105
      %p108 = scmp.ne.s32.totalorder %s93, %s107
      %p109 = scmp.eq.s32.totalorder %s20, 0
      %p110 = por %p108, %p109
      %s112 = sadd.s32 %s111, 1
      %p115 = scmp.eq.s32.totalorder %s14, 1
      %p116 = scmp.ne.s32.totalorder %s111, %s113
      %p117 = scmp.eq.s32.totalorder %s14, 0
      %p118 = por %p116, %p117
      %p119 = scmp.ne.s32.totalorder %s111, %s113
      %p120 = scmp.eq.s32.totalorder %s19, 1
      %p121 = por %p119, %p120
      %p122 = scmp.ne.s32.totalorder %s113, %s114
      %p123 = scmp.eq.s32.totalorder %s19, 0
      %p124 = por %p122, %p123
      %p125 = scmp.ne.s32.totalorder %s113, %s114
      %p126 = scmp.eq.s32.totalorder %s20, 1
      %p127 = por %p125, %p126
      %p129 = scmp.ne.s32.totalorder %s114, %s128
      %p130 = scmp.eq.s32.totalorder %s20, 0
      %p131 = por %p129, %p130
      %s132 = ssub.s32 %s14, %s21
      %p133 = scmp.eq.s32.totalorder %s132, 0
      %s135 = sadd.s32 %s134, 1
      %s136 = scalar_select %p133, %s134, %s135
      %p139 = pneg %p133
      %p140 = scmp.eq.s32.totalorder %s14, 1
      %p141 = por %p139, %p140
      %p142 = scmp.ne.s32.totalorder %s134, %s137
      %p143 = scmp.eq.s32.totalorder %s14, 0
      %p144 = por %p142, %p143
      %p145 = scmp.ne.s32.totalorder %s134, %s137
      %p146 = scmp.eq.s32.totalorder %s19, 1
      %p147 = por %p145, %p146
      %p148 = scmp.ne.s32.totalorder %s137, %s138
      %p149 = scmp.eq.s32.totalorder %s19, 0
      %p150 = por %p148, %p149
      %p151 = scmp.ne.s32.totalorder %s137, %s138
      %p152 = scmp.eq.s32.totalorder %s20, 1
      %p153 = por %p151, %p152
      %p155 = scmp.ne.s32.totalorder %s138, %s154
      %p156 = scmp.eq.s32.totalorder %s20, 0
      %p157 = por %p155, %p156
      %p158 = scmp.le.s32.totalorder 1, %s14
      %p159 = scmp.lt.s32.totalorder %s14, 3
      %p160 = pnand %p158, %p159
      %p161 = pneg %p160
      // Predicated region
      $region9: #{tpu_custom_call.1} parent=5 // pred_check
        _
      $region10: #{tpu_custom_call.1} parent=5 // pred_check_branch
        %163 = sbr.rel (%p160) target = $region12
      $region11: #{tpu_custom_call.1} parent=5 // pred_region
        %s164 = ssub.s32 %s14, 1
        // Predicated region
        $region13: #{tpu_custom_call.1} parent=11 // pred_check
          %p165 = pneg %p61
        $region14: #{tpu_custom_call.1} parent=11 // pred_check_branch
          %167 = sbr.rel (%p165) target = $region16
        $region15: #{tpu_custom_call.1} parent=11 // pred_region
          _
        $region16: #{tpu_custom_call.1} parent=11 // pred_fallthru
          _
        // Predicated region
        $region17: #{tpu_custom_call.1} parent=11 // pred_check
          %p168 = pneg %p82
        $region18: #{tpu_custom_call.1} parent=11 // pred_check_branch
          %170 = sbr.rel (%p168) target = $region20
        $region19: #{tpu_custom_call.1} parent=11 // pred_region
          _
        $region20: #{tpu_custom_call.1} parent=11 // pred_fallthru
          _
        // Predicated region
        $region21: #{tpu_custom_call.1} parent=11 // pred_check
          %p171 = pneg %p103
        $region22: #{tpu_custom_call.1} parent=11 // pred_check_branch
          %173 = sbr.rel (%p171) target = $region24
        $region23: #{tpu_custom_call.1} parent=11 // pred_region
          _
        $region24: #{tpu_custom_call.1} parent=11 // pred_fallthru
          _
        // Predicated region
        $region25: #{tpu_custom_call.1} parent=11 // pred_check
          %p174 = pneg %p124
        $region26: #{tpu_custom_call.1} parent=11 // pred_check_branch
          %176 = sbr.rel (%p174) target = $region28
        $region27: #{tpu_custom_call.1} parent=11 // pred_region
          _
        $region28: #{tpu_custom_call.1} parent=11 // pred_fallthru
          _
      $region12: #{tpu_custom_call.1} parent=5 // pred_fallthru
        _
      %p177 = scmp.lt.s32.totalorder %s14, 2
      // Predicated region
      $region29: #{tpu_custom_call.1} parent=5 // pred_check
        %p178 = pneg %p177
      $region30: #{tpu_custom_call.1} parent=5 // pred_check_branch
        %180 = sbr.rel (%p178) target = $region32
      $region31: #{tpu_custom_call.1} parent=5 // pred_region
        // Predicated region
        $region33: #{tpu_custom_call.1} parent=31 // pred_check
          %p181 = pneg %p34
        $region34: #{tpu_custom_call.1} parent=31 // pred_check_branch
          %183 = sbr.rel (%p181) target = $region36
        $region35: #{tpu_custom_call.1} parent=31 // pred_region
          %p184 = scmp.lt.s32.totalorder %s14, 1
          %s185 = scalar_select %p184, %s14, 1
          %s186 = smul.addr %s185, 2
          %s187 = smul.addr %s186, 4
          %s188 = scalar_lea.vmem %s0, %s187
        $region36: #{tpu_custom_call.1} parent=31 // pred_fallthru
          _
      $region32: #{tpu_custom_call.1} parent=5 // pred_fallthru
        _
      %p189 = scmp.le.s32.totalorder 1, %s14
      %p190 = scmp.lt.s32.totalorder %s14, 3
      %p191 = pnand %p189, %p190
      %p192 = pneg %p191
      // Predicated region
      $region37: #{tpu_custom_call.1} parent=5 // pred_check
        _
      $region38: #{tpu_custom_call.1} parent=5 // pred_check_branch
        %194 = sbr.rel (%p191) target = $region40
      $region39: #{tpu_custom_call.1} parent=5 // pred_region
        %s195 = ssub.s32 %s14, 1
        %p196 = scmp.lt.s32.totalorder %s19, 1
        %s197 = scalar_select %p196, %s19, 1
        %s198 = smul.addr %s197, 2
        %s199 = smul.addr %s198, 4
        %s200 = scalar_lea.vmem %s0, %s199
        %p201 = pneg %p40
        %p202 = pneg %p37
        %p203 = pneg %p61
        %p204 = pneg %p58
        %p205 = pneg %p82
        %p206 = pneg %p79
        %p207 = pneg %p103
        %p208 = pneg %p100
        %p209 = pneg %p124
        %p210 = pneg %p121
        %p211 = pneg %p150
        %p212 = pneg %p147
        %s213 = sand.u32 %s137, 1
        %s214 = scalar_lea.sflag [#allocation3], %s213
        %s215 = sand.u32 %s137, 1
        %s216 = smul.addr %s215, 8
        %s217 = scalar_lea.vmem [#allocation2], %s216
        %p218 = scmp.lt.s32.totalorder %s19, 1
        %s219 = scalar_select %p218, %s19, 1
        %s220 = smul.addr %s219, 2
        %s221 = smul.addr %s220, 4
        %s222 = scalar_lea.vmem %s0, %s221
        %v223 = vld [vmem:[%s222] sm:$0xff]
        %v225 = vcombine.high %v223, %v223
        %vm227 = vcmask 1043456
        %v228 = vsel %vm227, %v223, 0.0
        %v229 = vsel %vm227, %v225, 0.0
        %v230 = vadd.f32 %v228, %v229
        %231 = vadd.xlane.f32.xlu0 %v230
        %v232 = vpop.xlane.xlu0 %231
        %v233 = vrcp.pop 256.0
        %v234 = vmul.f32 %v232, %v233
        %v235 = vld [vmem:[%s1] sm:$0xf]
        %v236 = vld [vmem:[%s2] sm:$0x1]
        %v238 = vlaneseq
        %v239 = vand.u32 %v238, 127
        %v240 = vlaneseq
        %v241 = vshrl.u32 %v240, 7
        %v242 = vsub.s32 %v239, %v241
        %v243 = vrot.slane %v234, %v242
        %vm244 = vcmask 31744
        %v245 = vsel %vm244, %v243, 0
        %v248 = vsel %vm227, %v235, 0
        %250 = vmatprep.subr.mxu0 0.0
        %251 = vmatpush1.msra.mxu0 %v248
        %252 = vmatprep.subr.mxu0 0.0
        %253 = vmatpush1.msra.mxu0 0.0
        %254 = vmatprep.subr.mxu0 0.0
        %255 = vmatpush1.msra.mxu0 0.0
        %256 = vmatprep.subr.mxu0 0.0
        %257 = vmatpush1.msra.mxu0 0.0
        %258 = vmatprep.subr.mxu0 0.0
        %259 = vmatpush1.msra.mxu0 0.0
        %260 = vmatprep.subr.mxu0 0.0
        %261 = vmatpush1.msra.mxu0 0.0
        %262 = vmatprep.subr.mxu0 0.0
        %263 = vmatpush1.msra.mxu0 0.0
        %264 = vmatprep.subr.mxu0 0.0
        %265 = vmatpush1.msra.mxu0 0.0
        %266 = vmatprep.subr.mxu0 0.0
        %267 = vmatpush1.msra.mxu0 0.0
        %268 = vmatprep.subr.mxu0 0.0
        %269 = vmatpush1.msra.mxu0 0.0
        %270 = vmatprep.subr.mxu0 0.0
        %271 = vmatpush1.msra.mxu0 0.0
        %272 = vmatprep.subr.mxu0 0.0
        %273 = vmatpush1.msra.mxu0 0.0
        %274 = vmatprep.subr.mxu0 0.0
        %275 = vmatpush1.msra.mxu0 0.0
        %276 = vmatprep.subr.mxu0 0.0
        %277 = vmatpush1.msra.mxu0 0.0
        %278 = vmatprep.subr.mxu0 0.0
        %279 = vmatpush1.msra.mxu0 0.0
        %280 = vmatprep.subr.mxu0 0.0
        %281 = vmatpush1.msra.mxu0 0.0
        %282 = vmatprep.subr.mxu0 0.0
        %283 = vmatpush1.msra.mxu0 0.0
        %284 = vmatprep.subr.mxu0 0.0
        %285 = vmatpush1.msra.mxu0 0.0
        %286 = vmatprep.subr.mxu0 0.0
        %287 = vmatpush1.msra.mxu0 0.0
        %288 = vmatprep.subr.mxu0 0.0
        %289 = vmatpush1.msra.mxu0 0.0
        %290 = vmatprep.subr.mxu0 0.0
        %291 = vmatpush1.msra.mxu0 0.0
        %292 = vmatprep.subr.mxu0 0.0
        %293 = vmatpush1.msra.mxu0 0.0
        %294 = vmatprep.subr.mxu0 0.0
        %295 = vmatpush1.msra.mxu0 0.0
        %296 = vmatprep.subr.mxu0 0.0
        %297 = vmatpush1.msra.mxu0 0.0
        %298 = vmatprep.subr.mxu0 0.0
        %299 = vmatpush1.msra.mxu0 0.0
        %300 = vmatprep.subr.mxu0 0.0
        %301 = vmatpush1.msra.mxu0 0.0
        %302 = vmatprep.subr.mxu0 0.0
        %303 = vmatpush1.msra.mxu0 0.0
        %304 = vmatprep.subr.mxu0 0.0
        %305 = vmatpush1.msra.mxu0 0.0
        %306 = vmatprep.subr.mxu0 0.0
        %307 = vmatpush1.msra.mxu0 0.0
        %308 = vmatprep.subr.mxu0 0.0
        %309 = vmatpush1.msra.mxu0 0.0
        %310 = vmatprep.subr.mxu0 0.0
        %311 = vmatpush1.msra.mxu0 0.0
        %312 = vmatprep.subr.mxu0 0.0
        %313 = vmatpush1.msra.mxu0 0.0
        %314 = vmatprep.mubr.f32.mxu0 0.0
        %315 = vmatmul.mubr.f32.gmra.mrb[0].mxu0 %v245
        %v316 = vpop.f32.mrb[0].mxu0
        %v317 = vadd.f32 %v236, %v316
        %v318 = vpop.f32.mrb[0].mxu0
        %319 = vdwg.mxu0
        %v320 = vmax.f32 %v317, 0.0
        %v321 = vld [vmem:[%s3] sm:$0xff]
        %v322 = vld [vmem:[%s3 + $0x8] sm:$0xff]
        %v323 = vld [vmem:[%s3 + $0x10] sm:$0xff]
        %v324 = vld [vmem:[%s3 + $0x18] sm:$0xff]
        %v325 = vld [vmem:[%s4] sm:$0x1]
        %vm326 = vcmask 261120
        %v328 = vsel %vm326, %v320, 0
        %330 = vmatprep.subr.mxu0 0.0
        %331 = vmatpush1.msra.mxu0 %v321
        %332 = vmatprep.subr.mxu0 0.0
        %333 = vmatpush1.msra.mxu0 %v322
        %334 = vmatprep.subr.mxu0 0.0
        %335 = vmatpush1.msra.mxu0 %v323
        %336 = vmatprep.subr.mxu0 0.0
        %337 = vmatpush1.msra.mxu0 %v324
        %338 = vmatprep.subr.mxu0 0.0
        %339 = vmatpush1.msra.mxu0 0.0
        %340 = vmatprep.subr.mxu0 0.0
        %341 = vmatpush1.msra.mxu0 0.0
        %342 = vmatprep.subr.mxu0 0.0
        %343 = vmatpush1.msra.mxu0 0.0
        %344 = vmatprep.subr.mxu0 0.0
        %345 = vmatpush1.msra.mxu0 0.0
        %346 = vmatprep.subr.mxu0 0.0
        %347 = vmatpush1.msra.mxu0 0.0
        %348 = vmatprep.subr.mxu0 0.0
        %349 = vmatpush1.msra.mxu0 0.0
        %350 = vmatprep.subr.mxu0 0.0
        %351 = vmatpush1.msra.mxu0 0.0
        %352 = vmatprep.subr.mxu0 0.0
        %353 = vmatpush1.msra.mxu0 0.0
        %354 = vmatprep.subr.mxu0 0.0
        %355 = vmatpush1.msra.mxu0 0.0
        %356 = vmatprep.subr.mxu0 0.0
        %357 = vmatpush1.msra.mxu0 0.0
        %358 = vmatprep.subr.mxu0 0.0
        %359 = vmatpush1.msra.mxu0 0.0
        %360 = vmatprep.subr.mxu0 0.0
        %361 = vmatpush1.msra.mxu0 0.0
        %362 = vmatprep.subr.mxu0 0.0
        %363 = vmatpush1.msra.mxu0 0.0
        %364 = vmatprep.subr.mxu0 0.0
        %365 = vmatpush1.msra.mxu0 0.0
        %366 = vmatprep.subr.mxu0 0.0
        %367 = vmatpush1.msra.mxu0 0.0
        %368 = vmatprep.subr.mxu0 0.0
        %369 = vmatpush1.msra.mxu0 0.0
        %370 = vmatprep.subr.mxu0 0.0
        %371 = vmatpush1.msra.mxu0 0.0
        %372 = vmatprep.subr.mxu0 0.0
        %373 = vmatpush1.msra.mxu0 0.0
        %374 = vmatprep.subr.mxu0 0.0
        %375 = vmatpush1.msra.mxu0 0.0
        %376 = vmatprep.subr.mxu0 0.0
        %377 = vmatpush1.msra.mxu0 0.0
        %378 = vmatprep.subr.mxu0 0.0
        %379 = vmatpush1.msra.mxu0 0.0
        %380 = vmatprep.subr.mxu0 0.0
        %381 = vmatpush1.msra.mxu0 0.0
        %382 = vmatprep.subr.mxu0 0.0
        %383 = vmatpush1.msra.mxu0 0.0
        %384 = vmatprep.subr.mxu0 0.0
        %385 = vmatpush1.msra.mxu0 0.0
        %386 = vmatprep.subr.mxu0 0.0
        %387 = vmatpush1.msra.mxu0 0.0
        %388 = vmatprep.subr.mxu0 0.0
        %389 = vmatpush1.msra.mxu0 0.0
        %390 = vmatprep.subr.mxu0 0.0
        %391 = vmatpush1.msra.mxu0 0.0
        %392 = vmatprep.subr.mxu0 0.0
        %393 = vmatpush1.msra.mxu0 0.0
        %394 = vmatprep.mubr.f32.mxu0 0.0
        %395 = vmatmul.mubr.f32.gmra.mrb[0].mxu0 %v328
        %v396 = vpop.f32.mrb[0].mxu0
        %v397 = vadd.f32 %v325, %v396
        %v398 = vpop.f32.mrb[0].mxu0
        %399 = vdwg.mxu0
        %v400 = vxor.u32 %v397, 2147483648
        %v401 = vmul.f32 %v400, 1.442695
        %v402 = vpow.pop %v401
        %v403 = vadd.f32 %v402, 1.0
        %v404 = vrcp.pop %v403
        %v405 = vmul.f32 1.0, %v404
        %v406 = vlaneseq
        %v407 = vshrl.u32 %v406, 7
        %v408 = vsub.s32 0, %v407
        %v409 = vrot.slane %v405, %v408
        %411 = vbcast.lane.b32.xlu0 %v409, 256
        %v412 = vpop.permute.xlu0 %411
        %v415 = vunpack.c.l.s4 839922192
        %v416 = vunpack.c.0.s8 %v415
        %v417 = vlaneseq
        %v418 = vshrl.u32 %v417, 7
        %v419 = vsub.s32 %v416, %v418
        %v420 = vrot.slane %v412, %v419
        %v422 = vmul.f32 %v223, %v420
        %423 = vst [vmem:[%s217] sm:$0xff] %v422
        %s424 = sand.u32 %s137, 1
        %s425 = scalar_lea.sflag [#allocation3], %s424
        %s426 = sand.u32 %s137, 1
        %s427 = smul.addr %s426, 8
        %s428 = scalar_lea.vmem [#allocation2], %s427
        // Predicated region
        $region41: #{tpu_custom_call.1} parent=39 // pred_check
          %p429 = pneg %p147
        $region42: #{tpu_custom_call.1} parent=39 // pred_check_branch
          %431 = sbr.rel (%p429) target = $region44
        $region43: #{tpu_custom_call.1} parent=39 // pred_region
          %s433 = ssub.s32 128, 128
          %434 = vsyncadd %s425, %s433
          %s435 = smul.addr %s19, 2
          %s436 = smul.addr %s435, 64
          %s437 = scalar_lea.hbm %s5, %s436
          %s439 = sshll.u32 %s428, 4
          %s440 = int_to_ptr.vmem [resolvable:$true] %s439
          %442 = dma.vmem_to_hbm [thread:$0]  %s440, 128, %s437, %s425
        $region44: #{tpu_custom_call.1} parent=39 // pred_fallthru
          _
      $region40: #{tpu_custom_call.1} parent=5 // pred_fallthru
        _
      %p443 = scmp.le.s32.totalorder 2, %s14
      // Predicated region
      $region45: #{tpu_custom_call.1} parent=5 // pred_check
        %p444 = pneg %p443
      $region46: #{tpu_custom_call.1} parent=5 // pred_check_branch
        %446 = sbr.rel (%p444) target = $region48
      $region47: #{tpu_custom_call.1} parent=5 // pred_region
        %s447 = ssub.s32 %s14, 2
        // Predicated region
        $region49: #{tpu_custom_call.1} parent=47 // pred_check
          %p448 = pneg %p153
        $region50: #{tpu_custom_call.1} parent=47 // pred_check_branch
          %450 = sbr.rel (%p448) target = $region52
        $region51: #{tpu_custom_call.1} parent=47 // pred_region
          %s451 = sand.u32 %s138, 1
          %s452 = scalar_lea.sflag [#allocation3], %s451
          %s453 = sand.u32 %s138, 1
          %s454 = smul.addr %s453, 8
          %s455 = scalar_lea.vmem [#allocation2], %s454
          %456 = dma.done %s452, 128
        $region52: #{tpu_custom_call.1} parent=47 // pred_fallthru
          _
      $region48: #{tpu_custom_call.1} parent=5 // pred_fallthru
        _
    $region6: #{tpu_custom_call.1} parent=1 // loop_footer
      %s18 = sadd.s32 1, %s14
    $region7: #{tpu_custom_call.1} parent=1 // loop_footer_branch
      %13 = sbr.rel target = $region3
    $region8: #{tpu_custom_call.1} parent=1 // loop_exit
      _
    %457 = vsyncpa [#allocation3], 1
    %s458 = scalar_lea.sflag [#allocation3], 1
    %459 = vsyncpa %s458, 1

</llo_original>
